<compile_context>
chip_gen: v6e
topology: v6e:2x2x1
jax: 0.10.0
libtpu: 0.0.40
codegen_flags: <defaults>
</compile_context>

<pallas_src>
import jax
import jax.numpy as jnp
import numpy as np
from jax.experimental import pallas as pl
from jax.experimental.pallas import tpu as pltpu


def make_attention_kernel(B, T, Hd):
    """Builds the kernel with the (static) problem sizes closed over."""
    scale = (1.0 / Hd) ** 0.5   # folded into q (O(T*Hd), not O(T^2))
    neg_big = -1e30             # finite mask value: robust, identical softmax result

    def kernel(x_ref, wqkv_ref, bqkv_ref, o_ref):
        # x_ref: (B*T, E)  wqkv_ref: (E, 3*Hd)  bqkv_ref: (1, 3*Hd)  o_ref: (B*T, Hd)

        # Single fused QKV projection over all B*T tokens (one MXU push).
        # TODO(synk): at production sizes cast x/wqkv to bf16 here (keep f32 accumulate).
        qkv = jnp.dot(x_ref[...], wqkv_ref[...],
                      preferred_element_type=jnp.float32) + bqkv_ref[...]   # (B*T, 3*Hd)

        q = qkv[:, 0 * Hd:1 * Hd] * scale
        k = qkv[:, 1 * Hd:2 * Hd]
        v = qkv[:, 2 * Hd:3 * Hd]

        # Causal mask (~tril); diagonal always unmasked so the row max is finite.
        row = jax.lax.broadcasted_iota(jnp.int32, (T, T), 0)
        col = jax.lax.broadcasted_iota(jnp.int32, (T, T), 1)
        causal = col > row

        # B is tiny and static -> unrolled python loop of plain 2-D math.
        for b in range(B):
            qb = q[b * T:(b + 1) * T, :]
            kb = k[b * T:(b + 1) * T, :]
            vb = v[b * T:(b + 1) * T, :]

            # q @ k^T without materializing a transpose (contract last axes of both).
            attn = jax.lax.dot_general(
                qb, kb, dimension_numbers=(((1,), (1,)), ((), ())),
                preferred_element_type=jnp.float32)                         # (T, T)
            attn = jnp.where(causal, neg_big, attn)

            # Numerically-stable softmax; normalize AFTER P@V (O(T*Hd) scaling).
            m = jnp.max(attn, axis=-1, keepdims=True)
            p = jnp.exp(attn - m)
            denom = jnp.sum(p, axis=-1, keepdims=True)

            pv = jnp.dot(p, vb, preferred_element_type=jnp.float32)         # (T, Hd)
            out = pv * pl.reciprocal(denom, approx=False)                   # exact

            # Static, sublane-aligned slice store into the 2-D output slab.
            o_ref[b * T:(b + 1) * T, :] = out.astype(o_ref.dtype)

    return kernel


def fuse_qkv_params(wq, bq, wk, bk, wv, bv):
    """Precompute fused QKV weight/bias once (not per forward call)."""
    wqkv = jnp.concatenate([wq, wk, wv], axis=1)                 # (E, 3*Hd)
    bqkv = jnp.concatenate([bq, bk, bv]).reshape(1, -1)          # (1, 3*Hd)
    return wqkv, bqkv


@jax.jit
def attention_pallas(x, wqkv, bqkv):
    B, T, E = x.shape
    Hd = wqkv.shape[1] // 3

    out2d = pl.pallas_call(
        make_attention_kernel(B, T, Hd),
        out_shape=jax.ShapeDtypeStruct((B * T, Hd), x.dtype),
        # No grid: whole problem (~5 KB) lives in VMEM; no pipeline machinery.
        in_specs=[
            pl.BlockSpec(memory_space=pltpu.MemorySpace.VMEM),
            pl.BlockSpec(memory_space=pltpu.MemorySpace.VMEM),
            pl.BlockSpec(memory_space=pltpu.MemorySpace.VMEM),
        ],
        out_specs=pl.BlockSpec(memory_space=pltpu.MemorySpace.VMEM),
    )(x.reshape(B * T, E), wqkv, bqkv)

    return out2d.reshape(B, T, Hd)


def attention_reference(x, wq, bq, wk, bk, wv, bv):
    q = x @ wq + bq
    k = x @ wk + bk
    v = x @ wv + bv
    hd = wq.shape[1]
    attn = (q @ jnp.swapaxes(k, -2, -1)) * (1.0 / hd) ** 0.5
    T = x.shape[1]
    mask = ~jnp.tril(jnp.ones((T, T), dtype=bool))
    attn = jnp.where(mask, -jnp.inf, attn)
    return jax.nn.softmax(attn, axis=-1) @ v


if __name__ == "__main__":
    # config: n_layers=2, n_heads=4, n_embd=32, block_size=32  -> head_dim=8
    B, T, E, Hd = 2, 8, 32, 8

    key = jax.random.PRNGKey(0)
    kx, kq, kbq, kk, kbk, kv, kbv = jax.random.split(key, 7)

    x = jax.random.normal(kx, (B, T, E), dtype=jnp.float32)

    # Deterministic init mimicking nn.Linear's uniform(-1/sqrt(fan_in), 1/sqrt(fan_in)).
    # Weights stored transposed vs torch.nn.Linear: (E, head_dim), so y = x @ W + b.
    bound = 1.0 / np.sqrt(E)
    wq = jax.random.uniform(kq, (E, Hd), jnp.float32, -bound, bound)
    bq = jax.random.uniform(kbq, (Hd,), jnp.float32, -bound, bound)
    wk = jax.random.uniform(kk, (E, Hd), jnp.float32, -bound, bound)
    bk = jax.random.uniform(kbk, (Hd,), jnp.float32, -bound, bound)
    wv = jax.random.uniform(kv, (E, Hd), jnp.float32, -bound, bound)
    bv = jax.random.uniform(kbv, (Hd,), jnp.float32, -bound, bound)

    # Fused QKV params are computed once, outside the forward path.
    wqkv, bqkv = fuse_qkv_params(wq, bq, wk, bk, wv, bv)
    wqkv, bqkv = jax.block_until_ready((wqkv, bqkv))

    out = attention_pallas(x, wqkv, bqkv)
    jax.block_until_ready(out)

    ref = attention_reference(x, wq, bq, wk, bk, wv, bv)
    np.testing.assert_allclose(np.asarray(out), np.asarray(ref), atol=2e-4, rtol=2e-4)

    print("KERNEL_OK")
</pallas_src>

<mosaic_0001>
module attributes {stable_mosaic.version = 11 : i64} {
  func.func @kernel(%arg0: memref<16x32xf32, #tpu.memory_space<vmem>>, %arg1: memref<32x24xf32, #tpu.memory_space<vmem>>, %arg2: memref<1x24xf32, #tpu.memory_space<vmem>>, %arg3: memref<16x8xf32, #tpu.memory_space<vmem>>) attributes {dimension_semantics = [], scalar_prefetch = 0 : i64, scratch_operands = 0 : i64, tpu.core_type = #tpu.core_type<tc>} {
    %c0 = arith.constant 0 : index
    %c0_0 = arith.constant 0 : index
    %0 = vector.load %arg0[%c0, %c0_0] : memref<16x32xf32, #tpu.memory_space<vmem>>, vector<16x32xf32>
    %c0_1 = arith.constant 0 : index
    %c0_2 = arith.constant 0 : index
    %1 = vector.load %arg1[%c0_1, %c0_2] : memref<32x24xf32, #tpu.memory_space<vmem>>, vector<32x24xf32>
    %cst = arith.constant dense<0.000000e+00> : vector<16x24xf32>
    %2 = tpu.matmul %0, %1, %cst {dimension_numbers = #tpu.dot_dimension_numbers<[1], [0], [0], [1], [0, 0, 1, 1], [], []>} : vector<16x32xf32>, vector<32x24xf32>, vector<16x24xf32> -> vector<16x24xf32>
    %c0_3 = arith.constant 0 : index
    %c0_4 = arith.constant 0 : index
    %3 = vector.load %arg2[%c0_3, %c0_4] : memref<1x24xf32, #tpu.memory_space<vmem>>, vector<1x24xf32>
    %4 = vector.broadcast %3 : vector<1x24xf32> to vector<16x24xf32>
    %5 = arith.addf %2, %4 : vector<16x24xf32>
    %6 = vector.extract_strided_slice %5 {offsets = [0, 0], sizes = [16, 8], strides = [1, 1]} : vector<16x24xf32> to vector<16x8xf32>
    %cst_5 = arith.constant 0.353553385 : f32
    %7 = vector.broadcast %cst_5 : f32 to vector<16x8xf32>
    %8 = arith.mulf %6, %7 : vector<16x8xf32>
    %9 = vector.extract_strided_slice %5 {offsets = [0, 8], sizes = [16, 8], strides = [1, 1]} : vector<16x24xf32> to vector<16x8xf32>
    %10 = vector.extract_strided_slice %5 {offsets = [0, 16], sizes = [16, 8], strides = [1, 1]} : vector<16x24xf32> to vector<16x8xf32>
    %11 = tpu.iota {dimensions = array<i32: 0>} : vector<8x8xi32>
    %12 = tpu.iota {dimensions = array<i32: 1>} : vector<8x8xi32>
    %13 = arith.cmpi sgt, %12, %11 : vector<8x8xi32>
    %14 = vector.extract_strided_slice %8 {offsets = [0, 0], sizes = [8, 8], strides = [1, 1]} : vector<16x8xf32> to vector<8x8xf32>
    %15 = vector.extract_strided_slice %9 {offsets = [0, 0], sizes = [8, 8], strides = [1, 1]} : vector<16x8xf32> to vector<8x8xf32>
    %16 = vector.extract_strided_slice %10 {offsets = [0, 0], sizes = [8, 8], strides = [1, 1]} : vector<16x8xf32> to vector<8x8xf32>
    %cst_6 = arith.constant dense<0.000000e+00> : vector<8x8xf32>
    %17 = tpu.matmul %14, %15, %cst_6 {dimension_numbers = #tpu.dot_dimension_numbers<[1], [1], [0], [0], [0, 0, 1, 0], [], []>} : vector<8x8xf32>, vector<8x8xf32>, vector<8x8xf32> -> vector<8x8xf32>
    %cst_7 = arith.constant -1.000000e+30 : f32
    %18 = vector.broadcast %cst_7 : f32 to vector<8x8xf32>
    %19 = arith.select %13, %18, %17 : vector<8x8xi1>, vector<8x8xf32>
    %cst_8 = arith.constant dense<0xFF800000> : vector<8xf32>
    %20 = vector.multi_reduction <maximumf>, %19, %cst_8 [1] : vector<8x8xf32> to vector<8xf32>
    %21 = vector.shape_cast %20 : vector<8xf32> to vector<8x1xf32>
    %22 = vector.broadcast %21 : vector<8x1xf32> to vector<8x8xf32>
    %23 = arith.subf %19, %22 : vector<8x8xf32>
    %24 = math.exp %23 : vector<8x8xf32>
    %cst_9 = arith.constant dense<0.000000e+00> : vector<8xf32>
    %25 = vector.multi_reduction <add>, %24, %cst_9 [1] : vector<8x8xf32> to vector<8xf32>
    %26 = vector.shape_cast %25 : vector<8xf32> to vector<8x1xf32>
    %cst_10 = arith.constant dense<0.000000e+00> : vector<8x8xf32>
    %27 = tpu.matmul %24, %16, %cst_10 {dimension_numbers = #tpu.dot_dimension_numbers<[1], [0], [0], [1], [0, 0, 1, 1], [], []>} : vector<8x8xf32>, vector<8x8xf32>, vector<8x8xf32> -> vector<8x8xf32>
    %28 = tpu.reciprocal %26 : vector<8x1xf32> -> vector<8x1xf32>
    %29 = vector.broadcast %28 : vector<8x1xf32> to vector<8x8xf32>
    %30 = arith.mulf %27, %29 : vector<8x8xf32>
    %c0_11 = arith.constant 0 : index
    %c0_12 = arith.constant 0 : index
    %31 = vector.load %arg3[%c0_11, %c0_12] : memref<16x8xf32, #tpu.memory_space<vmem>>, vector<8x8xf32>
    tpu.vector_store %arg3[%c0_11, %c0_12], %30 {strides = array<i32>} : memref<16x8xf32, #tpu.memory_space<vmem>>, vector<8x8xf32>,
    %32 = vector.extract_strided_slice %8 {offsets = [8, 0], sizes = [8, 8], strides = [1, 1]} : vector<16x8xf32> to vector<8x8xf32>
    %33 = vector.extract_strided_slice %9 {offsets = [8, 0], sizes = [8, 8], strides = [1, 1]} : vector<16x8xf32> to vector<8x8xf32>
    %34 = vector.extract_strided_slice %10 {offsets = [8, 0], sizes = [8, 8], strides = [1, 1]} : vector<16x8xf32> to vector<8x8xf32>
    %cst_13 = arith.constant dense<0.000000e+00> : vector<8x8xf32>
    %35 = tpu.matmul %32, %33, %cst_13 {dimension_numbers = #tpu.dot_dimension_numbers<[1], [1], [0], [0], [0, 0, 1, 0], [], []>} : vector<8x8xf32>, vector<8x8xf32>, vector<8x8xf32> -> vector<8x8xf32>
    %cst_14 = arith.constant -1.000000e+30 : f32
    %36 = vector.broadcast %cst_14 : f32 to vector<8x8xf32>
    %37 = arith.select %13, %36, %35 : vector<8x8xi1>, vector<8x8xf32>
    %cst_15 = arith.constant dense<0xFF800000> : vector<8xf32>
    %38 = vector.multi_reduction <maximumf>, %37, %cst_15 [1] : vector<8x8xf32> to vector<8xf32>
    %39 = vector.shape_cast %38 : vector<8xf32> to vector<8x1xf32>
    %40 = vector.broadcast %39 : vector<8x1xf32> to vector<8x8xf32>
    %41 = arith.subf %37, %40 : vector<8x8xf32>
    %42 = math.exp %41 : vector<8x8xf32>
    %cst_16 = arith.constant dense<0.000000e+00> : vector<8xf32>
    %43 = vector.multi_reduction <add>, %42, %cst_16 [1] : vector<8x8xf32> to vector<8xf32>
    %44 = vector.shape_cast %43 : vector<8xf32> to vector<8x1xf32>
    %cst_17 = arith.constant dense<0.000000e+00> : vector<8x8xf32>
    %45 = tpu.matmul %42, %34, %cst_17 {dimension_numbers = #tpu.dot_dimension_numbers<[1], [0], [0], [1], [0, 0, 1, 1], [], []>} : vector<8x8xf32>, vector<8x8xf32>, vector<8x8xf32> -> vector<8x8xf32>
    %46 = tpu.reciprocal %44 : vector<8x1xf32> -> vector<8x1xf32>
    %47 = vector.broadcast %46 : vector<8x1xf32> to vector<8x8xf32>
    %48 = arith.mulf %45, %47 : vector<8x8xf32>
    %c8 = arith.constant 8 : index
    %c0_18 = arith.constant 0 : index
    %49 = vector.load %arg3[%c8, %c0_18] : memref<16x8xf32, #tpu.memory_space<vmem>>, vector<8x8xf32>
    tpu.vector_store %arg3[%c8, %c0_18], %48 {strides = array<i32>} : memref<16x8xf32, #tpu.memory_space<vmem>>, vector<8x8xf32>,
    return
  }
}

</mosaic_0001>

<llo_original>
// kernel: attention_pallas.1
$region0: #{attention_pallas.1}
  #allocation0 [shape = 'u32[]', space=smem, size = 0x4, offset = 0x4, fixed_abs, tag = 'smem constant byte address 0x4 - core index']
  #allocation1 [shape = 'u32[144,128]{1,0:T(1,128)}', space=vmem, size = 0x12000, scoped, tag = 'internal scratch']
  %s0 = inlined_call_operand.vmem [shape: f32[16,32], index: 0, kind: input, shape index: {}]
  %s1 = inlined_call_operand.vmem [shape: f32[32,24], index: 1, kind: input, shape index: {}]
  %s2 = inlined_call_operand.vmem [shape: f32[1,24], index: 2, kind: input, shape index: {}]
  %s3 = inlined_call_operand.hbm [shape: f32[16,8], index: 3, kind: output, shape index: {}]
  %s4 = sld [smem:[#allocation0]]
  $region22: #{attention_pallas.1} parent=0
    _
  %s6 = ssub.s32 1, %s4
  %s7 = scalar_select 0, %s6, %s4
  $region1: #{attention_pallas.1} parent=0
    #allocation2 [shape = 'u8[8192]{0}', space=vmem, size = 0x2000, scoped, tag = 'output window, operand 0, single buffered']
    #allocation3 [shape = 's32[1]{0}', space=sflag, size = 0x4, scoped, tag = 'scoped memory for attention_pallas.1']
    %8 = vsyncpa [#allocation3], 0
    // Predicated region
    $region2: #{attention_pallas.1} parent=1 // pred_check
      _
    $region3: #{attention_pallas.1} parent=1 // pred_check_branch
      %10 = sbr.rel (0) target = $region5
    $region4: #{attention_pallas.1} parent=1 // pred_region
      _
    $region5: #{attention_pallas.1} parent=1 // pred_fallthru
      _
    // Predicated region
    $region6: #{attention_pallas.1} parent=1 // pred_check
      _
    $region7: #{attention_pallas.1} parent=1 // pred_check_branch
      %12 = sbr.rel (0) target = $region9
    $region8: #{attention_pallas.1} parent=1 // pred_region
      _
    $region9: #{attention_pallas.1} parent=1 // pred_fallthru
      _
    // Predicated region
    $region10: #{attention_pallas.1} parent=1 // pred_check
      _
    $region11: #{attention_pallas.1} parent=1 // pred_check_branch
      %14 = sbr.rel (0) target = $region13
    $region12: #{attention_pallas.1} parent=1 // pred_region
      _
    $region13: #{attention_pallas.1} parent=1 // pred_fallthru
      _
    %v15 = vld [vmem:[%s0] sm:$0xff]
    %v16 = vld [vmem:[%s0 + $0x8] sm:$0xff]
    %v17 = vld [vmem:[%s1] sm:$0xff]
    %v18 = vld [vmem:[%s1 + $0x8] sm:$0xff]
    %v19 = vld [vmem:[%s1 + $0x10] sm:$0xff]
    %v20 = vld [vmem:[%s1 + $0x18] sm:$0xff]
    %v21 = vld [vmem:[%s2] sm:$0x1]
    %v23 = vlaneseq
    %v24 = vshrl.u32 %v23, 7
    %v25 = vsub.s32 0, %v24
    %v26 = vrot.slane %v21, %v25
    %vm28 = vcmask 261120
    %v30 = vsel %vm28, %v15, 0
    %v33 = vsel %vm28, %v16, 0
    %35 = vmatprep.subr.mxu0 0.0
    %36 = vmatpush1.msra.mxu0 0.0
    %37 = vmatprep.subr.mxu0 0.0
    %38 = vmatpush1.msra.mxu0 0.0
    %39 = vmatprep.subr.mxu0 0.0
    %40 = vmatpush1.msra.mxu0 0.0
    %41 = vmatprep.subr.mxu0 0.0
    %42 = vmatpush1.msra.mxu0 0.0
    %43 = vmatprep.subr.mxu0 0.0
    %44 = vmatpush1.msra.mxu0 0.0
    %45 = vmatprep.subr.mxu0 0.0
    %46 = vmatpush1.msra.mxu0 0.0
    %47 = vmatprep.subr.mxu0 0.0
    %48 = vmatpush1.msra.mxu0 0.0
    %49 = vmatprep.subr.mxu0 0.0
    %50 = vmatpush1.msra.mxu0 0.0
    %51 = vmatprep.subr.mxu0 0.0
    %52 = vmatpush1.msra.mxu0 0.0
    %53 = vmatprep.subr.mxu0 0.0
    %54 = vmatpush1.msra.mxu0 0.0
    %55 = vmatprep.subr.mxu0 0.0
    %56 = vmatpush1.msra.mxu0 0.0
    %57 = vmatprep.subr.mxu0 0.0
    %58 = vmatpush1.msra.mxu0 0.0
    %59 = vmatprep.subr.mxu0 0.0
    %60 = vmatpush1.msra.mxu0 %v20
    %61 = vmatprep.subr.mxu0 0.0
    %62 = vmatpush1.msra.mxu0 %v19
    %63 = vmatprep.subr.mxu0 0.0
    %64 = vmatpush1.msra.mxu0 %v18
    %65 = vmatprep.subr.mxu0 0.0
    %66 = vmatpush1.msra.mxu0 %v17
    %67 = vmatprep.subr.mxu0 0.0
    %68 = vmatpush2.msra.mxu0 0.0
    %69 = vmatprep.subr.mxu0 0.0
    %70 = vmatpush2.msra.mxu0 0.0
    %71 = vmatprep.subr.mxu0 0.0
    %72 = vmatpush2.msra.mxu0 0.0
    %73 = vmatprep.subr.mxu0 0.0
    %74 = vmatpush2.msra.mxu0 0.0
    %75 = vmatprep.subr.mxu0 0.0
    %76 = vmatpush2.msra.mxu0 0.0
    %77 = vmatprep.subr.mxu0 0.0
    %78 = vmatpush2.msra.mxu0 0.0
    %79 = vmatprep.subr.mxu0 0.0
    %80 = vmatpush2.msra.mxu0 0.0
    %81 = vmatprep.subr.mxu0 0.0
    %82 = vmatpush2.msra.mxu0 0.0
    %83 = vmatprep.subr.mxu0 0.0
    %84 = vmatpush2.msra.mxu0 0.0
    %85 = vmatprep.subr.mxu0 0.0
    %86 = vmatpush2.msra.mxu0 0.0
    %87 = vmatprep.subr.mxu0 0.0
    %88 = vmatpush2.msra.mxu0 0.0
    %89 = vmatprep.subr.mxu0 0.0
    %90 = vmatpush2.msra.mxu0 0.0
    %91 = vmatprep.subr.mxu0 0.0
    %92 = vmatpush2.msra.mxu0 0.0
    %93 = vmatprep.subr.mxu0 0.0
    %94 = vmatpush2.msra.mxu0 0.0
    %95 = vmatprep.subr.mxu0 0.0
    %96 = vmatpush2.msra.mxu0 0.0
    %97 = vmatprep.subr.mxu0 0.0
    %98 = vmatpush2.msra.mxu0 0.0
    %99 = vmatprep.mubr.f32.mxu0 0.0
    %100 = vmatmul.mubr.f32.gmra.mxu0 %v30
    %v101 = vpop.f32.mrf.mxu0
    %v102 = vadd.f32 %v26, %v101
    %v103 = vpop.f32.mrf.mxu0
    %104 = vmatprep.mubr.f32.mxu0 0.0
    %105 = vmatmul.mubr.f32.gmra.mxu0 %v33
    %v106 = vpop.f32.mrf.mxu0
    %v107 = vadd.f32 %v26, %v106
    %v108 = vpop.f32.mrf.mxu0
    %109 = vdwg.mxu0
    %v110 = vmul.f32 %v102, 0.35355338
    %v111 = vmul.f32 %v107, 0.35355338
    %v112 = vlaneseq
    %v113 = vshrl.u32 %v112, 7
    %v114 = vlaneseq
    %v115 = vand.u32 %v114, 127
    %vm116 = vcmp.gt.s32.totalorder %v115, %v113
    %118 = vrot.lane.b32.xlu0 %v102, 120
    %v119 = vpop.permute.xlu0 %118
    %vm120 = vcmask 64512
    %v122 = vsel %vm120, %v110, 0
    %v124 = vsel %vm120, %v119, 0
    %126 = vmatprep.subr.mxu0 0.0
    %127 = vmatpush1.xpose.msra.mxu0 0.0
    %128 = vmatprep.subr.mxu0 0.0
    %129 = vmatpush1.xpose.msra.mxu0 0.0
    %130 = vmatprep.subr.mxu0 0.0
    %131 = vmatpush1.xpose.msra.mxu0 0.0
    %132 = vmatprep.subr.mxu0 0.0
    %133 = vmatpush1.xpose.msra.mxu0 0.0
    %134 = vmatprep.subr.mxu0 0.0
    %135 = vmatpush1.xpose.msra.mxu0 0.0
    %136 = vmatprep.subr.mxu0 0.0
    %137 = vmatpush1.xpose.msra.mxu0 0.0
    %138 = vmatprep.subr.mxu0 0.0
    %139 = vmatpush1.xpose.msra.mxu0 0.0
    %140 = vmatprep.subr.mxu0 0.0
    %141 = vmatpush1.xpose.msra.mxu0 0.0
    %142 = vmatprep.subr.mxu0 0.0
    %143 = vmatpush1.xpose.msra.mxu0 0.0
    %144 = vmatprep.subr.mxu0 0.0
    %145 = vmatpush1.xpose.msra.mxu0 0.0
    %146 = vmatprep.subr.mxu0 0.0
    %147 = vmatpush1.xpose.msra.mxu0 0.0
    %148 = vmatprep.subr.mxu0 0.0
    %149 = vmatpush1.xpose.msra.mxu0 0.0
    %150 = vmatprep.subr.mxu0 0.0
    %151 = vmatpush1.xpose.msra.mxu0 0.0
    %152 = vmatprep.subr.mxu0 0.0
    %153 = vmatpush1.xpose.msra.mxu0 0.0
    %154 = vmatprep.subr.mxu0 0.0
    %155 = vmatpush1.xpose.msra.mxu0 0.0
    %156 = vmatprep.subr.mxu0 0.0
    %157 = vmatpush1.xpose.msra.mxu0 %v124
    %158 = vmatprep.subr.mxu0 0.0
    %159 = vmatpush2.xpose.msra.mxu0 0.0
    %160 = vmatprep.subr.mxu0 0.0
    %161 = vmatpush2.xpose.msra.mxu0 0.0
    %162 = vmatprep.subr.mxu0 0.0
    %163 = vmatpush2.xpose.msra.mxu0 0.0
    %164 = vmatprep.subr.mxu0 0.0
    %165 = vmatpush2.xpose.msra.mxu0 0.0
    %166 = vmatprep.subr.mxu0 0.0
    %167 = vmatpush2.xpose.msra.mxu0 0.0
    %168 = vmatprep.subr.mxu0 0.0
    %169 = vmatpush2.xpose.msra.mxu0 0.0
    %170 = vmatprep.subr.mxu0 0.0
    %171 = vmatpush2.xpose.msra.mxu0 0.0
    %172 = vmatprep.subr.mxu0 0.0
    %173 = vmatpush2.xpose.msra.mxu0 0.0
    %174 = vmatprep.subr.mxu0 0.0
    %175 = vmatpush2.xpose.msra.mxu0 0.0
    %176 = vmatprep.subr.mxu0 0.0
    %177 = vmatpush2.xpose.msra.mxu0 0.0
    %178 = vmatprep.subr.mxu0 0.0
    %179 = vmatpush2.xpose.msra.mxu0 0.0
    %180 = vmatprep.subr.mxu0 0.0
    %181 = vmatpush2.xpose.msra.mxu0 0.0
    %182 = vmatprep.subr.mxu0 0.0
    %183 = vmatpush2.xpose.msra.mxu0 0.0
    %184 = vmatprep.subr.mxu0 0.0
    %185 = vmatpush2.xpose.msra.mxu0 0.0
    %186 = vmatprep.subr.mxu0 0.0
    %187 = vmatpush2.xpose.msra.mxu0 0.0
    %188 = vmatprep.subr.mxu0 0.0
    %189 = vmatpush2.xpose.msra.mxu0 0.0
    %190 = vmatprep.mubr.f32.mxu0 0.0
    %191 = vmatmul.mubr.f32.gmra.mxu0 %v122
    %v192 = vpop.f32.mrf.mxu0
    %v193 = vadd.f32 0.0, %v192
    %v194 = vpop.f32.mrf.mxu0
    %195 = vdwg.mxu0
    %v196 = vsel %vm116, -1e+30, %v193
    %v197 = vsel %vm120, %v196, -inf
    %198 = vmax.xlane.f32.xlu0 %v197
    %v199 = vpop.xlane.xlu0 %198
    %v200 = vsub.f32 %v196, %v199
    %v201 = vmul.f32 %v200, 1.442695
    %v202 = vpow.pop %v201
    %v203 = vsel %vm120, %v202, 0.0
    %204 = vadd.xlane.f32.xlu0 %v203
    %v205 = vpop.xlane.xlu0 %204
    %206 = vrot.lane.b32.xlu0 %v102, 112
    %v207 = vpop.permute.xlu0 %206
    %v210 = vsel %vm120, %v202, 0
    %212 = vmatprep.subr.mxu0 0.0
    %213 = vmatpush1.msra.mxu0 0.0
    %214 = vmatprep.subr.mxu0 0.0
    %215 = vmatpush1.msra.mxu0 0.0
    %216 = vmatprep.subr.mxu0 0.0
    %217 = vmatpush1.msra.mxu0 0.0
    %218 = vmatprep.subr.mxu0 0.0
    %219 = vmatpush1.msra.mxu0 0.0
    %220 = vmatprep.subr.mxu0 0.0
    %221 = vmatpush1.msra.mxu0 0.0
    %222 = vmatprep.subr.mxu0 0.0
    %223 = vmatpush1.msra.mxu0 0.0
    %224 = vmatprep.subr.mxu0 0.0
    %225 = vmatpush1.msra.mxu0 0.0
    %226 = vmatprep.subr.mxu0 0.0
    %227 = vmatpush1.msra.mxu0 0.0
    %228 = vmatprep.subr.mxu0 0.0
    %229 = vmatpush1.msra.mxu0 0.0
    %230 = vmatprep.subr.mxu0 0.0
    %231 = vmatpush1.msra.mxu0 0.0
    %232 = vmatprep.subr.mxu0 0.0
    %233 = vmatpush1.msra.mxu0 0.0
    %234 = vmatprep.subr.mxu0 0.0
    %235 = vmatpush1.msra.mxu0 0.0
    %236 = vmatprep.subr.mxu0 0.0
    %237 = vmatpush1.msra.mxu0 0.0
    %238 = vmatprep.subr.mxu0 0.0
    %239 = vmatpush1.msra.mxu0 0.0
    %240 = vmatprep.subr.mxu0 0.0
    %241 = vmatpush1.msra.mxu0 0.0
    %242 = vmatprep.subr.mxu0 0.0
    %243 = vmatpush1.msra.mxu0 %v207
    %244 = vmatprep.subr.mxu0 0.0
    %245 = vmatpush2.msra.mxu0 0.0
    %246 = vmatprep.subr.mxu0 0.0
    %247 = vmatpush2.msra.mxu0 0.0
    %248 = vmatprep.subr.mxu0 0.0
    %249 = vmatpush2.msra.mxu0 0.0
    %250 = vmatprep.subr.mxu0 0.0
    %251 = vmatpush2.msra.mxu0 0.0
    %252 = vmatprep.subr.mxu0 0.0
    %253 = vmatpush2.msra.mxu0 0.0
    %254 = vmatprep.subr.mxu0 0.0
    %255 = vmatpush2.msra.mxu0 0.0
    %256 = vmatprep.subr.mxu0 0.0
    %257 = vmatpush2.msra.mxu0 0.0
    %258 = vmatprep.subr.mxu0 0.0
    %259 = vmatpush2.msra.mxu0 0.0
    %260 = vmatprep.subr.mxu0 0.0
    %261 = vmatpush2.msra.mxu0 0.0
    %262 = vmatprep.subr.mxu0 0.0
    %263 = vmatpush2.msra.mxu0 0.0
    %264 = vmatprep.subr.mxu0 0.0
    %265 = vmatpush2.msra.mxu0 0.0
    %266 = vmatprep.subr.mxu0 0.0
    %267 = vmatpush2.msra.mxu0 0.0
    %268 = vmatprep.subr.mxu0 0.0
    %269 = vmatpush2.msra.mxu0 0.0
    %270 = vmatprep.subr.mxu0 0.0
    %271 = vmatpush2.msra.mxu0 0.0
    %272 = vmatprep.subr.mxu0 0.0
    %273 = vmatpush2.msra.mxu0 0.0
    %274 = vmatprep.subr.mxu0 0.0
    %275 = vmatpush2.msra.mxu0 0.0
    %276 = vmatprep.mubr.f32.mxu0 0.0
    %277 = vmatmul.mubr.f32.gmra.mxu0 %v210
    %v278 = vpop.f32.mrf.mxu0
    %v279 = vadd.f32 0.0, %v278
    %v280 = vpop.f32.mrf.mxu0
    %281 = vdwg.mxu0
    %v282 = vrcp.pop %v205
    %v283 = vmul.f32 %v279, %v282
    %284 = vst.msk [vmem:[#allocation2] sm:$0xff] %vm120, %v283
    %286 = vrot.lane.b32.xlu0 %v107, 120
    %v287 = vpop.permute.xlu0 %286
    %v289 = vsel %vm120, %v111, 0
    %v291 = vsel %vm120, %v287, 0
    %293 = vmatprep.subr.mxu0 0.0
    %294 = vmatpush1.xpose.msra.mxu0 0.0
    %295 = vmatprep.subr.mxu0 0.0
    %296 = vmatpush1.xpose.msra.mxu0 0.0
    %297 = vmatprep.subr.mxu0 0.0
    %298 = vmatpush1.xpose.msra.mxu0 0.0
    %299 = vmatprep.subr.mxu0 0.0
    %300 = vmatpush1.xpose.msra.mxu0 0.0
    %301 = vmatprep.subr.mxu0 0.0
    %302 = vmatpush1.xpose.msra.mxu0 0.0
    %303 = vmatprep.subr.mxu0 0.0
    %304 = vmatpush1.xpose.msra.mxu0 0.0
    %305 = vmatprep.subr.mxu0 0.0
    %306 = vmatpush1.xpose.msra.mxu0 0.0
    %307 = vmatprep.subr.mxu0 0.0
    %308 = vmatpush1.xpose.msra.mxu0 0.0
    %309 = vmatprep.subr.mxu0 0.0
    %310 = vmatpush1.xpose.msra.mxu0 0.0
    %311 = vmatprep.subr.mxu0 0.0
    %312 = vmatpush1.xpose.msra.mxu0 0.0
    %313 = vmatprep.subr.mxu0 0.0
    %314 = vmatpush1.xpose.msra.mxu0 0.0
    %315 = vmatprep.subr.mxu0 0.0
    %316 = vmatpush1.xpose.msra.mxu0 0.0
    %317 = vmatprep.subr.mxu0 0.0
    %318 = vmatpush1.xpose.msra.mxu0 0.0
    %319 = vmatprep.subr.mxu0 0.0
    %320 = vmatpush1.xpose.msra.mxu0 0.0
    %321 = vmatprep.subr.mxu0 0.0
    %322 = vmatpush1.xpose.msra.mxu0 0.0
    %323 = vmatprep.subr.mxu0 0.0
    %324 = vmatpush1.xpose.msra.mxu0 %v291
    %325 = vmatprep.subr.mxu0 0.0
    %326 = vmatpush2.xpose.msra.mxu0 0.0
    %327 = vmatprep.subr.mxu0 0.0
    %328 = vmatpush2.xpose.msra.mxu0 0.0
    %329 = vmatprep.subr.mxu0 0.0
    %330 = vmatpush2.xpose.msra.mxu0 0.0
    %331 = vmatprep.subr.mxu0 0.0
    %332 = vmatpush2.xpose.msra.mxu0 0.0
    %333 = vmatprep.subr.mxu0 0.0
    %334 = vmatpush2.xpose.msra.mxu0 0.0
    %335 = vmatprep.subr.mxu0 0.0
    %336 = vmatpush2.xpose.msra.mxu0 0.0
    %337 = vmatprep.subr.mxu0 0.0
    %338 = vmatpush2.xpose.msra.mxu0 0.0
    %339 = vmatprep.subr.mxu0 0.0
    %340 = vmatpush2.xpose.msra.mxu0 0.0
    %341 = vmatprep.subr.mxu0 0.0
    %342 = vmatpush2.xpose.msra.mxu0 0.0
    %343 = vmatprep.subr.mxu0 0.0
    %344 = vmatpush2.xpose.msra.mxu0 0.0
    %345 = vmatprep.subr.mxu0 0.0
    %346 = vmatpush2.xpose.msra.mxu0 0.0
    %347 = vmatprep.subr.mxu0 0.0
    %348 = vmatpush2.xpose.msra.mxu0 0.0
    %349 = vmatprep.subr.mxu0 0.0
    %350 = vmatpush2.xpose.msra.mxu0 0.0
    %351 = vmatprep.subr.mxu0 0.0
    %352 = vmatpush2.xpose.msra.mxu0 0.0
    %353 = vmatprep.subr.mxu0 0.0
    %354 = vmatpush2.xpose.msra.mxu0 0.0
    %355 = vmatprep.subr.mxu0 0.0
    %356 = vmatpush2.xpose.msra.mxu0 0.0
    %357 = vmatprep.mubr.f32.mxu0 0.0
    %358 = vmatmul.mubr.f32.gmra.mxu0 %v289
    %v359 = vpop.f32.mrf.mxu0
    %v360 = vadd.f32 0.0, %v359
    %v361 = vpop.f32.mrf.mxu0
    %362 = vdwg.mxu0
    %v363 = vsel %vm116, -1e+30, %v360
    %v364 = vsel %vm120, %v363, -inf
    %365 = vmax.xlane.f32.xlu0 %v364
    %v366 = vpop.xlane.xlu0 %365
    %v367 = vsub.f32 %v363, %v366
    %v368 = vmul.f32 %v367, 1.442695
    %v369 = vpow.pop %v368
    %v370 = vsel %vm120, %v369, 0.0
    %371 = vadd.xlane.f32.xlu0 %v370
    %v372 = vpop.xlane.xlu0 %371
    %373 = vrot.lane.b32.xlu0 %v107, 112
    %v374 = vpop.permute.xlu0 %373
    %v377 = vsel %vm120, %v369, 0
    %379 = vmatprep.subr.mxu0 0.0
    %380 = vmatpush1.msra.mxu0 0.0
    %381 = vmatprep.subr.mxu0 0.0
    %382 = vmatpush1.msra.mxu0 0.0
    %383 = vmatprep.subr.mxu0 0.0
    %384 = vmatpush1.msra.mxu0 0.0
    %385 = vmatprep.subr.mxu0 0.0
    %386 = vmatpush1.msra.mxu0 0.0
    %387 = vmatprep.subr.mxu0 0.0
    %388 = vmatpush1.msra.mxu0 0.0
    %389 = vmatprep.subr.mxu0 0.0
    %390 = vmatpush1.msra.mxu0 0.0
    %391 = vmatprep.subr.mxu0 0.0
    %392 = vmatpush1.msra.mxu0 0.0
    %393 = vmatprep.subr.mxu0 0.0
    %394 = vmatpush1.msra.mxu0 0.0
    %395 = vmatprep.subr.mxu0 0.0
    %396 = vmatpush1.msra.mxu0 0.0
    %397 = vmatprep.subr.mxu0 0.0
    %398 = vmatpush1.msra.mxu0 0.0
    %399 = vmatprep.subr.mxu0 0.0
    %400 = vmatpush1.msra.mxu0 0.0
    %401 = vmatprep.subr.mxu0 0.0
    %402 = vmatpush1.msra.mxu0 0.0
    %403 = vmatprep.subr.mxu0 0.0
    %404 = vmatpush1.msra.mxu0 0.0
    %405 = vmatprep.subr.mxu0 0.0
    %406 = vmatpush1.msra.mxu0 0.0
    %407 = vmatprep.subr.mxu0 0.0
    %408 = vmatpush1.msra.mxu0 0.0
    %409 = vmatprep.subr.mxu0 0.0
    %410 = vmatpush1.msra.mxu0 %v374
    %411 = vmatprep.subr.mxu0 0.0
    %412 = vmatpush2.msra.mxu0 0.0
    %413 = vmatprep.subr.mxu0 0.0
    %414 = vmatpush2.msra.mxu0 0.0
    %415 = vmatprep.subr.mxu0 0.0
    %416 = vmatpush2.msra.mxu0 0.0
    %417 = vmatprep.subr.mxu0 0.0
    %418 = vmatpush2.msra.mxu0 0.0
    %419 = vmatprep.subr.mxu0 0.0
    %420 = vmatpush2.msra.mxu0 0.0
    %421 = vmatprep.subr.mxu0 0.0
    %422 = vmatpush2.msra.mxu0 0.0
    %423 = vmatprep.subr.mxu0 0.0
    %424 = vmatpush2.msra.mxu0 0.0
    %425 = vmatprep.subr.mxu0 0.0
    %426 = vmatpush2.msra.mxu0 0.0
    %427 = vmatprep.subr.mxu0 0.0
    %428 = vmatpush2.msra.mxu0 0.0
    %429 = vmatprep.subr.mxu0 0.0
    %430 = vmatpush2.msra.mxu0 0.0
    %431 = vmatprep.subr.mxu0 0.0
    %432 = vmatpush2.msra.mxu0 0.0
    %433 = vmatprep.subr.mxu0 0.0
    %434 = vmatpush2.msra.mxu0 0.0
    %435 = vmatprep.subr.mxu0 0.0
    %436 = vmatpush2.msra.mxu0 0.0
    %437 = vmatprep.subr.mxu0 0.0
    %438 = vmatpush2.msra.mxu0 0.0
    %439 = vmatprep.subr.mxu0 0.0
    %440 = vmatpush2.msra.mxu0 0.0
    %441 = vmatprep.subr.mxu0 0.0
    %442 = vmatpush2.msra.mxu0 0.0
    %443 = vmatprep.mubr.f32.mxu0 0.0
    %444 = vmatmul.mubr.f32.gmra.mxu0 %v377
    %v445 = vpop.f32.mrf.mxu0
    %v446 = vadd.f32 0.0, %v445
    %v447 = vpop.f32.mrf.mxu0
    %448 = vdwg.mxu0
    %v449 = vrcp.pop %v372
    %v450 = vmul.f32 %v446, %v449
    %451 = vst.msk [vmem:[#allocation2 + $0x8] sm:$0xff] %vm120, %v450
    // Predicated region
    $region14: #{attention_pallas.1} parent=1 // pred_check
      _
    $region15: #{attention_pallas.1} parent=1 // pred_check_branch
      %453 = sbr.rel (0) target = $region17
    $region16: #{attention_pallas.1} parent=1 // pred_region
      %s455 = ssub.s32 256, 256
      %456 = vsyncadd [#allocation3], %s455
      %s457 = sshll.u32 [#allocation2], 4
      %s458 = int_to_ptr.vmem [resolvable:$true] %s457
      %463 = dma.vmem_to_hbm [thread:$0]  %s458, 256, %s3, [#allocation3], 128, 128, 8
    $region17: #{attention_pallas.1} parent=1 // pred_fallthru
      _
    // Predicated region
    $region18: #{attention_pallas.1} parent=1 // pred_check
      _
    $region19: #{attention_pallas.1} parent=1 // pred_check_branch
      %465 = sbr.rel (0) target = $region21
    $region20: #{attention_pallas.1} parent=1 // pred_region
      %466 = dma.done [#allocation3], 256
    $region21: #{attention_pallas.1} parent=1 // pred_fallthru
      _
    %467 = vsyncpa [#allocation3], 1

</llo_original>
